<compile_context>
chip_gen: v7x
topology: tpu7x:2x2x1
jax: 0.10.0
libtpu: 0.0.40
codegen_flags: <defaults>
</compile_context>

<pallas_src>
import jax
import jax.numpy as jnp
from jax import lax
from jax.experimental import pallas as pl
from jax.experimental.pallas import tpu as pltpu


def _round_up(x, m):
    return (x + m - 1) // m * m


def _foreach(n, body, *, max_unrolled=32, unroll=8):
    """body(r) for r in [0, n): fully unrolled when small, fori_loop otherwise."""
    if n <= max_unrolled:
        for r in range(n):
            body(r)
    else:
        def wrapped(r, carry):
            body(r)
            return carry
        lax.fori_loop(0, n, wrapped, 0, unroll=unroll)


def _vmem_table_kernel(ids_ref, emb_ref, pe_ref, out_ref, buf_ref):
    """Fast path: table resident in VMEM, rows gathered by dynamic VMEM indexing.

    ids_ref: SMEM (batch*seq_pad,) int32   scalar-prefetched token ids
    emb_ref: VMEM (vocab_pad, d_pad)       resident table (constant block index)
    pe_ref : VMEM (rows, d_pad)            PE tile for this seq tile
    out_ref: VMEM (1, rows, d_pad)
    buf_ref: VMEM (rows, d_pad)            gathered rows
    """
    t = pl.program_id(0)
    b = pl.program_id(1)
    rows = buf_ref.shape[0]
    vocab_pad = emb_ref.shape[0]
    seq_pad = pl.num_programs(0) * rows
    base = b * seq_pad + t * rows

    def gather_row(r):
        tok = ids_ref[base + r]
        # Clamp out-of-range ids (VMEM reads are not bounds checked).  PyTorch's
        # nn.Embedding would raise instead; documented semantic difference.
        tok = jnp.minimum(jnp.maximum(tok, 0), vocab_pad - 1)
        buf_ref[pl.ds(r, 1), :] = emb_ref[pl.ds(tok, 1), :]

    _foreach(rows, gather_row)

    # Single dense VPU add + one lane-dense (rows, d_pad) store.
    out_ref[0] = (buf_ref[...].astype(jnp.float32)
                  + pe_ref[...].astype(jnp.float32)).astype(out_ref.dtype)


def _hbm_gather_kernel(ids_ref, emb_hbm, pe_ref, out_ref, gather_buf, copy_sems):
    """Fallback: table stays in HBM, per-row DMA gather double-buffered over batch.

    ids_ref:    SMEM (batch*seq_pad,) int32
    emb_hbm:    HBM  (vocab_pad, d_pad)
    pe_ref:     VMEM (rows, d_pad)
    out_ref:    VMEM (1, rows, d_pad)
    gather_buf: VMEM (2, rows, d_pad)   double-buffered gathered rows
    copy_sems:  DMA semaphores, shape (2, rows)
    """
    t = pl.program_id(0)
    b = pl.program_id(1)
    nbatch = pl.num_programs(1)
    rows = gather_buf.shape[1]
    seq_pad = pl.num_programs(0) * rows
    n_table_rows = emb_hbm.shape[0]
    cur = b % 2

    def start_fetch(batch_idx, slot):
        base = batch_idx * seq_pad + t * rows

        def issue(r):
            tok = ids_ref[base + r]
            tok = jnp.minimum(jnp.maximum(tok, 0), n_table_rows - 1)
            pltpu.make_async_copy(
                emb_hbm.at[pl.ds(tok, 1)],
                gather_buf.at[slot, pl.ds(r, 1)],
                copy_sems.at[slot, r],
            ).start()

        _foreach(rows, issue)

    # First batch element of this seq tile: nothing is in flight yet.
    @pl.when(b == 0)
    def _():
        start_fetch(0, 0)

    # Prefetch the next batch element's rows (same seq tile, guaranteed to run on
    # this core since the batch axis is "arbitrary") BEFORE any .wait(): the HBM
    # gather overlaps this step's add/store/writeback and the SMEM id reads stay
    # ahead of the semaphore waits.
    @pl.when(b + 1 < nbatch)
    def _():
        start_fetch(b + 1, (b + 1) % 2)

    def wait_row(r):
        # Waits are shape/semaphore matched; descriptors started in the previous
        # grid step cannot be retained across steps, so rebuild with a
        # shape-equivalent source slice (same pattern as the paged-attention
        # reference kernel).
        pltpu.make_async_copy(
            emb_hbm.at[pl.ds(0, 1)],
            gather_buf.at[cur, pl.ds(r, 1)],
            copy_sems.at[cur, r],
        ).wait()

    _foreach(rows, wait_row)

    out_ref[0] = (gather_buf[cur].astype(jnp.float32)
                  + pe_ref[...].astype(jnp.float32)).astype(out_ref.dtype)


def seq_embedding(ids, emb_table, pe, *, seq_tile=256,
                  vmem_table_budget_bytes=4 * 1024 * 1024,
                  vmem_limit_bytes=None,
                  force_hbm_gather=False):
    """SeqEmbedding forward: out[b, s, :] = emb_table[ids[b, s], :] + pe[s, :].

    ids: (batch, seq_len) int | emb_table: (vocab, d_model) | pe: (seq_len, d_model)
    """
    batch, seq_len = ids.shape
    vocab, d_model = emb_table.shape
    assert pe.shape == (seq_len, d_model)
    out_dtype = emb_table.dtype

    # Lane-dense last dim; sublane-aligned rows per grid step.
    d_pad = _round_up(d_model, 128)
    rows = _round_up(min(seq_tile, _round_up(seq_len, 8)), 8)
    seq_pad = _round_up(seq_len, rows)
    seq_tiles = seq_pad // rows
    vocab_pad = _round_up(vocab, 8)

    # 1-D int32 ids for SMEM scalar prefetch (2-D SMEM pads to (8,128) words).
    ids_flat = jnp.pad(ids.astype(jnp.int32),
                       ((0, 0), (0, seq_pad - seq_len))).reshape(batch * seq_pad)
    emb_p = jnp.pad(emb_table, ((0, vocab_pad - vocab), (0, d_pad - d_model)))
    pe_p = jnp.pad(pe, ((0, seq_pad - seq_len), (0, d_pad - d_model)))

    table_bytes = vocab_pad * d_pad * emb_p.dtype.itemsize
    use_vmem_table = (not force_hbm_gather) and table_bytes <= vmem_table_budget_bytes

    if use_vmem_table:
        grid_spec = pltpu.PrefetchScalarGridSpec(
            num_scalar_prefetch=1,                               # ids -> SMEM
            grid=(seq_tiles, batch),
            in_specs=[
                # Whole table, constant block index -> fetched once, stays resident.
                pl.BlockSpec((vocab_pad, d_pad), lambda t, b, ids: (0, 0)),
                # PE tile; index constant across the inner batch axis -> no re-fetch.
                pl.BlockSpec((rows, d_pad), lambda t, b, ids: (t, 0)),
            ],
            out_specs=pl.BlockSpec((1, rows, d_pad), lambda t, b, ids: (b, t, 0)),
            scratch_shapes=[pltpu.VMEM((rows, d_pad), emb_p.dtype)],
        )
        kernel = _vmem_table_kernel
        dim_sem = ("parallel", "parallel")         # both axes independent (v7x megacore)
    else:
        grid_spec = pltpu.PrefetchScalarGridSpec(
            num_scalar_prefetch=1,
            grid=(seq_tiles, batch),
            in_specs=[
                pl.BlockSpec(memory_space=pl.ANY),               # table stays in HBM
                pl.BlockSpec((rows, d_pad), lambda t, b, ids: (t, 0)),
            ],
            out_specs=pl.BlockSpec((1, rows, d_pad), lambda t, b, ids: (b, t, 0)),
            scratch_shapes=[
                pltpu.VMEM((2, rows, d_pad), emb_p.dtype),       # double-buffered gather
                pltpu.SemaphoreType.DMA((2, rows)),
            ],
        )
        kernel = _hbm_gather_kernel
        # Batch axis must be sequential: it carries the double-buffer prefetch.
        dim_sem = ("parallel", "arbitrary")

    out = pl.pallas_call(
        kernel,
        out_shape=jax.ShapeDtypeStruct((batch, seq_pad, d_pad), out_dtype),
        grid_spec=grid_spec,
        compiler_params=pltpu.CompilerParams(
            dimension_semantics=dim_sem,
            vmem_limit_bytes=vmem_limit_bytes,
        ),
    )(ids_flat, emb_p, pe_p)

    return out[:, :seq_len, :d_model]


def make_positional_encoding(seq_len, d_model, dtype=jnp.float32):
    """Standard 'Attention is All You Need' sinusoidal PE (handles odd d_model)."""
    pos = jnp.arange(seq_len, dtype=jnp.float32)[:, None]           # (S, 1)
    i = jnp.arange(0, d_model, 2, dtype=jnp.float32)[None, :]       # (1, ceil(D/2))
    angle = pos / jnp.power(10000.0, i / float(d_model))            # (S, ceil(D/2))
    pe = jnp.zeros((seq_len, d_model), jnp.float32)
    pe = pe.at[:, 0::2].set(jnp.sin(angle))
    pe = pe.at[:, 1::2].set(jnp.cos(angle[:, : d_model // 2]))
    return pe.astype(dtype)


if __name__ == "__main__":
    vocab_size = 64
    d_model = 32
    batch = 2
    seq_len = 8

    key = jax.random.PRNGKey(0)
    k_emb, k_ids = jax.random.split(key)

    # deterministic "parameters" (nn.Embedding weight ~ N(0, 1))
    emb_table = jax.random.normal(k_emb, (vocab_size, d_model), dtype=jnp.float32)
    pe = make_positional_encoding(seq_len, d_model)

    # deterministic example input: LongTensor of token ids, shape [batch, seq_len]
    ids = jax.random.randint(k_ids, (batch, seq_len), 0, vocab_size, dtype=jnp.int32)

    # pure-JAX reference: embedding lookup + positional encoding add
    ref = emb_table[ids] + pe[None, :, :]

    # Fast path (VMEM-resident table).
    out_fast = jax.block_until_ready(seq_embedding(ids, emb_table, pe))
    assert out_fast.shape == (batch, seq_len, d_model)
    assert jnp.allclose(out_fast, ref, atol=1e-6, rtol=1e-6)

    # HBM-gather fallback path (forced, to validate the large-vocab code path).
    out_hbm = jax.block_until_ready(
        seq_embedding(ids, emb_table, pe, force_hbm_gather=True))
    assert out_hbm.shape == (batch, seq_len, d_model)
    assert jnp.allclose(out_hbm, ref, atol=1e-6, rtol=1e-6)

    print("KERNEL_OK")
</pallas_src>

<mosaic_0001>
module attributes {stable_mosaic.version = 11 : i64} {
  func.func @_vmem_table_kernel(%arg0: i32, %arg1: i32, %arg2: memref<16xi32, #tpu.memory_space<smem>>, %arg3: memref<64x128xf32, #tpu.memory_space<vmem>>, %arg4: memref<8x128xf32, #tpu.memory_space<vmem>>, %arg5: memref<1x8x128xf32, #tpu.memory_space<vmem>>, %arg6: memref<8x128xf32, #tpu.memory_space<vmem>>) attributes {dimension_semantics = [#tpu.dimension_semantics<parallel>, #tpu.dimension_semantics<parallel>], iteration_bounds = array<i64: 1, 2>, scalar_prefetch = 1 : i64, scratch_operands = 1 : i64, tpu.core_type = #tpu.core_type<tc>, window_params = [{pipeline_mode = #tpu.pipeline_mode<synchronous>, transform_indices = @transform_0, window_bounds = array<i64: 64, 128>}, {transform_indices = @transform_1, window_bounds = array<i64: 8, 128>}, {transform_indices = @transform_2, window_bounds = array<i64: 1, 8, 128>}]} {
    %c8_i32 = arith.constant 8 : i32
    %0 = arith.muli %arg1, %c8_i32 : i32
    %c8_i32_0 = arith.constant 8 : i32
    %1 = arith.muli %arg0, %c8_i32_0 : i32
    %2 = arith.addi %0, %1 : i32
    %c0_i32 = arith.constant 0 : i32
    %3 = arith.addi %2, %c0_i32 : i32
    %4 = arith.index_cast %3 : i32 to index
    %5 = memref.load %arg2[%4] : memref<16xi32, #tpu.memory_space<smem>>
    %c0_i32_1 = arith.constant 0 : i32
    %6 = arith.maxsi %5, %c0_i32_1 : i32
    %c63_i32 = arith.constant 63 : i32
    %7 = arith.minsi %6, %c63_i32 : i32
    %8 = arith.index_cast %7 : i32 to index
    %c0 = arith.constant 0 : index
    %9 = vector.load %arg3[%8, %c0] : memref<64x128xf32, #tpu.memory_space<vmem>>, vector<1x128xf32>
    %c0_2 = arith.constant 0 : index
    %c0_3 = arith.constant 0 : index
    %10 = vector.load %arg6[%c0_2, %c0_3] : memref<8x128xf32, #tpu.memory_space<vmem>>, vector<1x128xf32>
    tpu.vector_store %arg6[%c0_2, %c0_3], %9 {strides = array<i32>} : memref<8x128xf32, #tpu.memory_space<vmem>>, vector<1x128xf32>,
    %c1_i32 = arith.constant 1 : i32
    %11 = arith.addi %2, %c1_i32 : i32
    %12 = arith.index_cast %11 : i32 to index
    %13 = memref.load %arg2[%12] : memref<16xi32, #tpu.memory_space<smem>>
    %c0_i32_4 = arith.constant 0 : i32
    %14 = arith.maxsi %13, %c0_i32_4 : i32
    %c63_i32_5 = arith.constant 63 : i32
    %15 = arith.minsi %14, %c63_i32_5 : i32
    %16 = arith.index_cast %15 : i32 to index
    %c0_6 = arith.constant 0 : index
    %17 = vector.load %arg3[%16, %c0_6] : memref<64x128xf32, #tpu.memory_space<vmem>>, vector<1x128xf32>
    %c1 = arith.constant 1 : index
    %c0_7 = arith.constant 0 : index
    %18 = vector.load %arg6[%c1, %c0_7] : memref<8x128xf32, #tpu.memory_space<vmem>>, vector<1x128xf32>
    tpu.vector_store %arg6[%c1, %c0_7], %17 {strides = array<i32>} : memref<8x128xf32, #tpu.memory_space<vmem>>, vector<1x128xf32>,
    %c2_i32 = arith.constant 2 : i32
    %19 = arith.addi %2, %c2_i32 : i32
    %20 = arith.index_cast %19 : i32 to index
    %21 = memref.load %arg2[%20] : memref<16xi32, #tpu.memory_space<smem>>
    %c0_i32_8 = arith.constant 0 : i32
    %22 = arith.maxsi %21, %c0_i32_8 : i32
    %c63_i32_9 = arith.constant 63 : i32
    %23 = arith.minsi %22, %c63_i32_9 : i32
    %24 = arith.index_cast %23 : i32 to index
    %c0_10 = arith.constant 0 : index
    %25 = vector.load %arg3[%24, %c0_10] : memref<64x128xf32, #tpu.memory_space<vmem>>, vector<1x128xf32>
    %c2 = arith.constant 2 : index
    %c0_11 = arith.constant 0 : index
    %26 = vector.load %arg6[%c2, %c0_11] : memref<8x128xf32, #tpu.memory_space<vmem>>, vector<1x128xf32>
    tpu.vector_store %arg6[%c2, %c0_11], %25 {strides = array<i32>} : memref<8x128xf32, #tpu.memory_space<vmem>>, vector<1x128xf32>,
    %c3_i32 = arith.constant 3 : i32
    %27 = arith.addi %2, %c3_i32 : i32
    %28 = arith.index_cast %27 : i32 to index
    %29 = memref.load %arg2[%28] : memref<16xi32, #tpu.memory_space<smem>>
    %c0_i32_12 = arith.constant 0 : i32
    %30 = arith.maxsi %29, %c0_i32_12 : i32
    %c63_i32_13 = arith.constant 63 : i32
    %31 = arith.minsi %30, %c63_i32_13 : i32
    %32 = arith.index_cast %31 : i32 to index
    %c0_14 = arith.constant 0 : index
    %33 = vector.load %arg3[%32, %c0_14] : memref<64x128xf32, #tpu.memory_space<vmem>>, vector<1x128xf32>
    %c3 = arith.constant 3 : index
    %c0_15 = arith.constant 0 : index
    %34 = vector.load %arg6[%c3, %c0_15] : memref<8x128xf32, #tpu.memory_space<vmem>>, vector<1x128xf32>
    tpu.vector_store %arg6[%c3, %c0_15], %33 {strides = array<i32>} : memref<8x128xf32, #tpu.memory_space<vmem>>, vector<1x128xf32>,
    %c4_i32 = arith.constant 4 : i32
    %35 = arith.addi %2, %c4_i32 : i32
    %36 = arith.index_cast %35 : i32 to index
    %37 = memref.load %arg2[%36] : memref<16xi32, #tpu.memory_space<smem>>
    %c0_i32_16 = arith.constant 0 : i32
    %38 = arith.maxsi %37, %c0_i32_16 : i32
    %c63_i32_17 = arith.constant 63 : i32
    %39 = arith.minsi %38, %c63_i32_17 : i32
    %40 = arith.index_cast %39 : i32 to index
    %c0_18 = arith.constant 0 : index
    %41 = vector.load %arg3[%40, %c0_18] : memref<64x128xf32, #tpu.memory_space<vmem>>, vector<1x128xf32>
    %c4 = arith.constant 4 : index
    %c0_19 = arith.constant 0 : index
    %42 = vector.load %arg6[%c4, %c0_19] : memref<8x128xf32, #tpu.memory_space<vmem>>, vector<1x128xf32>
    tpu.vector_store %arg6[%c4, %c0_19], %41 {strides = array<i32>} : memref<8x128xf32, #tpu.memory_space<vmem>>, vector<1x128xf32>,
    %c5_i32 = arith.constant 5 : i32
    %43 = arith.addi %2, %c5_i32 : i32
    %44 = arith.index_cast %43 : i32 to index
    %45 = memref.load %arg2[%44] : memref<16xi32, #tpu.memory_space<smem>>
    %c0_i32_20 = arith.constant 0 : i32
    %46 = arith.maxsi %45, %c0_i32_20 : i32
    %c63_i32_21 = arith.constant 63 : i32
    %47 = arith.minsi %46, %c63_i32_21 : i32
    %48 = arith.index_cast %47 : i32 to index
    %c0_22 = arith.constant 0 : index
    %49 = vector.load %arg3[%48, %c0_22] : memref<64x128xf32, #tpu.memory_space<vmem>>, vector<1x128xf32>
    %c5 = arith.constant 5 : index
    %c0_23 = arith.constant 0 : index
    %50 = vector.load %arg6[%c5, %c0_23] : memref<8x128xf32, #tpu.memory_space<vmem>>, vector<1x128xf32>
    tpu.vector_store %arg6[%c5, %c0_23], %49 {strides = array<i32>} : memref<8x128xf32, #tpu.memory_space<vmem>>, vector<1x128xf32>,
    %c6_i32 = arith.constant 6 : i32
    %51 = arith.addi %2, %c6_i32 : i32
    %52 = arith.index_cast %51 : i32 to index
    %53 = memref.load %arg2[%52] : memref<16xi32, #tpu.memory_space<smem>>
    %c0_i32_24 = arith.constant 0 : i32
    %54 = arith.maxsi %53, %c0_i32_24 : i32
    %c63_i32_25 = arith.constant 63 : i32
    %55 = arith.minsi %54, %c63_i32_25 : i32
    %56 = arith.index_cast %55 : i32 to index
    %c0_26 = arith.constant 0 : index
    %57 = vector.load %arg3[%56, %c0_26] : memref<64x128xf32, #tpu.memory_space<vmem>>, vector<1x128xf32>
    %c6 = arith.constant 6 : index
    %c0_27 = arith.constant 0 : index
    %58 = vector.load %arg6[%c6, %c0_27] : memref<8x128xf32, #tpu.memory_space<vmem>>, vector<1x128xf32>
    tpu.vector_store %arg6[%c6, %c0_27], %57 {strides = array<i32>} : memref<8x128xf32, #tpu.memory_space<vmem>>, vector<1x128xf32>,
    %c7_i32 = arith.constant 7 : i32
    %59 = arith.addi %2, %c7_i32 : i32
    %60 = arith.index_cast %59 : i32 to index
    %61 = memref.load %arg2[%60] : memref<16xi32, #tpu.memory_space<smem>>
    %c0_i32_28 = arith.constant 0 : i32
    %62 = arith.maxsi %61, %c0_i32_28 : i32
    %c63_i32_29 = arith.constant 63 : i32
    %63 = arith.minsi %62, %c63_i32_29 : i32
    %64 = arith.index_cast %63 : i32 to index
    %c0_30 = arith.constant 0 : index
    %65 = vector.load %arg3[%64, %c0_30] : memref<64x128xf32, #tpu.memory_space<vmem>>, vector<1x128xf32>
    %c7 = arith.constant 7 : index
    %c0_31 = arith.constant 0 : index
    %66 = vector.load %arg6[%c7, %c0_31] : memref<8x128xf32, #tpu.memory_space<vmem>>, vector<1x128xf32>
    tpu.vector_store %arg6[%c7, %c0_31], %65 {strides = array<i32>} : memref<8x128xf32, #tpu.memory_space<vmem>>, vector<1x128xf32>,
    %c0_32 = arith.constant 0 : index
    %c0_33 = arith.constant 0 : index
    %67 = vector.load %arg6[%c0_32, %c0_33] : memref<8x128xf32, #tpu.memory_space<vmem>>, vector<8x128xf32>
    %c0_34 = arith.constant 0 : index
    %c0_35 = arith.constant 0 : index
    %68 = vector.load %arg4[%c0_34, %c0_35] : memref<8x128xf32, #tpu.memory_space<vmem>>, vector<8x128xf32>
    %69 = arith.addf %67, %68 : vector<8x128xf32>
    %c0_36 = arith.constant 0 : index
    %c0_37 = arith.constant 0 : index
    %c0_38 = arith.constant 0 : index
    %70 = vector.load %arg5[%c0_36, %c0_37, %c0_38] : memref<1x8x128xf32, #tpu.memory_space<vmem>>, vector<1x8x128xf32>
    %71 = vector.shape_cast %70 : vector<1x8x128xf32> to vector<8x128xf32>
    %72 = vector.shape_cast %69 : vector<8x128xf32> to vector<1x8x128xf32>
    tpu.vector_store %arg5[%c0_36, %c0_37, %c0_38], %72 {strides = array<i32>} : memref<1x8x128xf32, #tpu.memory_space<vmem>>, vector<1x8x128xf32>,
    return
  }
  func.func @transform_0(%arg0: i32, %arg1: i32, %arg2: memref<16xi32, #tpu.memory_space<smem>>) -> (i32, i32) {
    %c0_i32 = arith.constant 0 : i32
    %c0_i32_0 = arith.constant 0 : i32
    %c0_i32_1 = arith.constant 0 : i32
    return %c0_i32, %c0_i32_0 : i32, i32
  }
  func.func @transform_1(%arg0: i32, %arg1: i32, %arg2: memref<16xi32, #tpu.memory_space<smem>>) -> (i32, i32) {
    %c0_i32 = arith.constant 0 : i32
    %c0_i32_0 = arith.constant 0 : i32
    return %arg0, %c0_i32 : i32, i32
  }
  func.func @transform_2(%arg0: i32, %arg1: i32, %arg2: memref<16xi32, #tpu.memory_space<smem>>) -> (i32, i32, i32) {
    %c0_i32 = arith.constant 0 : i32
    %c0_i32_0 = arith.constant 0 : i32
    return %arg1, %arg0, %c0_i32 : i32, i32, i32
  }
}

</mosaic_0001>

<llo_original>
// kernel: tpu_custom_call.1
$region0: #{tpu_custom_call.1}
  #allocation0 [shape = 'u32[]', space=smem, size = 0x4, offset = 0x4, fixed_abs, tag = 'smem constant byte address 0x4 - core index']
  #allocation1 [shape = 'u32[144,128]{1,0:T(1,128)}', space=vmem, size = 0x12000, scoped, tag = 'internal scratch']
  #allocation2 [shape = 'f32[8,128]{1,0:T(8,128)}', space=vmem, size = 0x1000, scoped, tag = 'scratch operand']
  #allocation3 [shape = 's32[1]{0}', space=sflag, size = 0x4, scoped, tag = 'scoped memory for tpu_custom_call.1']
  #allocation4 [shape = 'u8[512]{0}', space=smem, size = 0x200, scoped, tag = 'prefetched SMEM operand 0']
  %s0 = inlined_call_operand.hbm [shape: s32[16], index: 0, kind: input, shape index: {}]
  %s1 = inlined_call_operand.hbm [shape: f32[64,128], index: 1, kind: input, shape index: {}]
  %s2 = inlined_call_operand.hbm [shape: f32[8,128], index: 2, kind: input, shape index: {}]
  %s3 = inlined_call_operand.hbm [shape: f32[2,8,128], index: 3, kind: output, shape index: {}]
  %s4 = sld [smem:[#allocation0]]
  $region49: #{tpu_custom_call.1} parent=0
    _
  %s6 = ssub.s32 1, %s4
  %s7 = scalar_select 0, %s6, %s4
  %9 = dma.hbm_to_smem %s0, 16, [#allocation4], [#allocation3]
  %10 = dma.done [#allocation3], 16
  %11 = sfence
  $region1: #{tpu_custom_call.1} parent=0
    #allocation5 [shape = 'u8[32768]{0}', space=vmem, size = 0x8000, scoped, tag = 'input window, operand 1, single buffered']
    #allocation6 [shape = 's32[2]{0}', space=sflag, size = 0x8, scoped, tag = 'scoped memory for tpu_custom_call.1']
    #allocation7 [shape = 's32[2]{0}', space=sflag, size = 0x8, scoped, tag = 'scoped memory for tpu_custom_call.1']
    #allocation8 [shape = 'u8[4096]{0}', space=vmem, size = 0x1000, scoped, tag = 'input window, operand 2, single buffered']
    #allocation9 [shape = 's32[1]{0}', space=sflag, size = 0x4, scoped, tag = 'scoped memory for tpu_custom_call.1']
    #allocation10 [shape = 'u8[8192]{0}', space=vmem, size = 0x2000, scoped, tag = 'output window, operand 0']
    %12 = vsyncpa [#allocation6], 0
    %13 = vsyncpa [#allocation9], 0
    %14 = vsyncpa [#allocation7], 0
    %s15 = scalar_lea.sflag [#allocation7], 1
    %16 = vsyncpa %s15, 0
    loop: start=0, step=1, limit=4
    $region2: #{tpu_custom_call.1} parent=1 // loop_pre_header
      _
    $region3: #{tpu_custom_call.1} parent=1 // loop_header
      %s18 = sphi 0, %s22
      %p19 = scmp.ge.s32.totalorder %s18, 4
      %s25 = sphi 0, %s37
      %s26 = sphi 0, %s33
      %s27 = sphi 0, %s25
      %s28 = sphi 0, %s26
      %s29 = sphi 0, %s27
      %s30 = sphi 0, %s28
      %s38 = sphi 0, %s38
      %s40 = sphi 0, %s38
      %s41 = sphi 0, %s40
      %s55 = sphi 0, %s41
      %s61 = sphi 0, %s63
      %s64 = sphi 0, %s61
      %s65 = sphi 0, %s64
      %s81 = sphi 0, %s65
      %s89 = sphi 0, %s91
      %s92 = sphi 0, %s89
      %s93 = sphi 0, %s92
      %s109 = sphi 0, %s93
    $region4: #{tpu_custom_call.1} parent=1 // loop_header_branch
      %21 = sbr.rel (%p19) target = $region8
    $region5: #{tpu_custom_call.1} parent=1 // loop_body
      %s23 = ssub.s32 %s18, 1
      %s24 = ssub.s32 %s18, 2
      %s31 = sadd.s32 1, %s26
      %p32 = scmp.ge.s32.totalorder %s31, 2
      %s33 = scalar_select %p32, 0, %s31
      %s34 = sadd.s32 1, %s25
      %s35 = scalar_select %p32, %s34, %s25
      %p36 = scmp.ge.s32.totalorder %s35, 1
      %s37 = scalar_select %p36, 0, %s35
      %s39 = sadd.s32 %s38, 1
      %p42 = scmp.eq.s32.totalorder %s18, 1
      %p43 = scmp.ne.s32.totalorder %s38, %s40
      %p44 = scmp.eq.s32.totalorder %s18, 0
      %p45 = por %p43, %p44
      %p46 = scmp.ne.s32.totalorder %s38, %s40
      %p47 = scmp.eq.s32.totalorder %s23, 1
      %p48 = por %p46, %p47
      %p49 = scmp.ne.s32.totalorder %s40, %s41
      %p50 = scmp.eq.s32.totalorder %s23, 0
      %p51 = por %p49, %p50
      %p52 = scmp.ne.s32.totalorder %s40, %s41
      %p53 = scmp.eq.s32.totalorder %s24, 1
      %p54 = por %p52, %p53
      %p56 = scmp.ne.s32.totalorder %s41, %s55
      %p57 = scmp.eq.s32.totalorder %s24, 0
      %p58 = por %p56, %p57
      %s59 = ssub.s32 %s25, %s37
      %p60 = scmp.eq.s32.totalorder %s59, 0
      %s62 = sadd.s32 %s61, 1
      %s63 = scalar_select %p60, %s61, %s62
      %p66 = pneg %p60
      %p67 = scmp.eq.s32.totalorder %s18, 1
      %p68 = por %p66, %p67
      %p69 = scmp.ne.s32.totalorder %s61, %s64
      %p70 = scmp.eq.s32.totalorder %s18, 0
      %p71 = por %p69, %p70
      %p72 = scmp.ne.s32.totalorder %s61, %s64
      %p73 = scmp.eq.s32.totalorder %s23, 1
      %p74 = por %p72, %p73
      %p75 = scmp.ne.s32.totalorder %s64, %s65
      %p76 = scmp.eq.s32.totalorder %s23, 0
      %p77 = por %p75, %p76
      %p78 = scmp.ne.s32.totalorder %s64, %s65
      %p79 = scmp.eq.s32.totalorder %s24, 1
      %p80 = por %p78, %p79
      %p82 = scmp.ne.s32.totalorder %s65, %s81
      %p83 = scmp.eq.s32.totalorder %s24, 0
      %p84 = por %p82, %p83
      %s85 = ssub.s32 %s26, %s33
      %s86 = ssub.s32 %s25, %s37
      %s87 = sor.u32 %s85, %s86
      %p88 = scmp.eq.s32.totalorder %s87, 0
      %s90 = sadd.s32 %s89, 1
      %s91 = scalar_select %p88, %s89, %s90
      %p94 = pneg %p88
      %p95 = scmp.eq.s32.totalorder %s18, 1
      %p96 = por %p94, %p95
      %p97 = scmp.ne.s32.totalorder %s89, %s92
      %p98 = scmp.eq.s32.totalorder %s18, 0
      %p99 = por %p97, %p98
      %p100 = scmp.ne.s32.totalorder %s89, %s92
      %p101 = scmp.eq.s32.totalorder %s23, 1
      %p102 = por %p100, %p101
      %p103 = scmp.ne.s32.totalorder %s92, %s93
      %p104 = scmp.eq.s32.totalorder %s23, 0
      %p105 = por %p103, %p104
      %p106 = scmp.ne.s32.totalorder %s92, %s93
      %p107 = scmp.eq.s32.totalorder %s24, 1
      %p108 = por %p106, %p107
      %p110 = scmp.ne.s32.totalorder %s93, %s109
      %p111 = scmp.eq.s32.totalorder %s24, 0
      %p112 = por %p110, %p111
      %p113 = scmp.le.s32.totalorder 1, %s18
      %p114 = scmp.lt.s32.totalorder %s18, 3
      %p115 = pnand %p113, %p114
      %p116 = pneg %p115
      // Predicated region
      $region9: #{tpu_custom_call.1} parent=5 // pred_check
        _
      $region10: #{tpu_custom_call.1} parent=5 // pred_check_branch
        %118 = sbr.rel (%p115) target = $region12
      $region11: #{tpu_custom_call.1} parent=5 // pred_region
        %s119 = ssub.s32 %s18, 1
        // Predicated region
        $region13: #{tpu_custom_call.1} parent=11 // pred_check
          %p120 = pneg %p51
        $region14: #{tpu_custom_call.1} parent=11 // pred_check_branch
          %122 = sbr.rel (%p120) target = $region16
        $region15: #{tpu_custom_call.1} parent=11 // pred_region
          %s124 = ssub.s32 1024, 1024
          %125 = vsyncadd [#allocation6], %s124
          %s126 = sshll.u32 [#allocation5], 4
          %s127 = int_to_ptr.vmem [resolvable:$true] %s126
          %132 = dma.hbm_to_vmem [thread:$0]  %s1, 1024, %s127, [#allocation6], 128, 128, 8
        $region16: #{tpu_custom_call.1} parent=11 // pred_fallthru
          _
        // Predicated region
        $region17: #{tpu_custom_call.1} parent=11 // pred_check
          %p133 = pneg %p77
        $region18: #{tpu_custom_call.1} parent=11 // pred_check_branch
          %135 = sbr.rel (%p133) target = $region20
        $region19: #{tpu_custom_call.1} parent=11 // pred_region
          %s137 = ssub.s32 128, 128
          %138 = vsyncadd [#allocation9], %s137
          %s139 = smul.addr %s27, 128
          %s140 = scalar_lea.hbm %s2, %s139
          %s142 = sshll.u32 [#allocation8], 4
          %s143 = int_to_ptr.vmem [resolvable:$true] %s142
          %145 = dma.hbm_to_vmem [thread:$0]  %s140, 128, %s143, [#allocation9]
        $region20: #{tpu_custom_call.1} parent=11 // pred_fallthru
          _
      $region12: #{tpu_custom_call.1} parent=5 // pred_fallthru
        _
      %p146 = scmp.lt.s32.totalorder %s18, 2
      // Predicated region
      $region21: #{tpu_custom_call.1} parent=5 // pred_check
        %p147 = pneg %p146
      $region22: #{tpu_custom_call.1} parent=5 // pred_check_branch
        %149 = sbr.rel (%p147) target = $region24
      $region23: #{tpu_custom_call.1} parent=5 // pred_region
        _
      $region24: #{tpu_custom_call.1} parent=5 // pred_fallthru
        _
      %p150 = scmp.le.s32.totalorder 1, %s18
      %p151 = scmp.lt.s32.totalorder %s18, 3
      %p152 = pnand %p150, %p151
      %p153 = pneg %p152
      // Predicated region
      $region25: #{tpu_custom_call.1} parent=5 // pred_check
        _
      $region26: #{tpu_custom_call.1} parent=5 // pred_check_branch
        %155 = sbr.rel (%p152) target = $region28
      $region27: #{tpu_custom_call.1} parent=5 // pred_region
        %s156 = ssub.s32 %s18, 1
        // Predicated region
        $region29: #{tpu_custom_call.1} parent=27 // pred_check
          %p157 = pneg %p51
        $region30: #{tpu_custom_call.1} parent=27 // pred_check_branch
          %159 = sbr.rel (%p157) target = $region32
        $region31: #{tpu_custom_call.1} parent=27 // pred_region
          %160 = dma.done [#allocation6], 1024
        $region32: #{tpu_custom_call.1} parent=27 // pred_fallthru
          _
        // Predicated region
        $region33: #{tpu_custom_call.1} parent=27 // pred_check
          %p161 = pneg %p77
        $region34: #{tpu_custom_call.1} parent=27 // pred_check_branch
          %163 = sbr.rel (%p161) target = $region36
        $region35: #{tpu_custom_call.1} parent=27 // pred_region
          %164 = dma.done [#allocation9], 128
        $region36: #{tpu_custom_call.1} parent=27 // pred_fallthru
          _
        %p165 = pneg %p51
        %p166 = pneg %p48
        %p167 = pneg %p77
        %p168 = pneg %p74
        %p169 = pneg %p105
        %p170 = pneg %p102
        %s171 = sand.u32 %s92, 1
        %s172 = scalar_lea.sflag [#allocation7], %s171
        %s173 = sand.u32 %s92, 1
        %s174 = smul.addr %s173, 8
        %s175 = scalar_lea.vmem [#allocation10], %s174
        %s176 = smul.u32 %s28, 8
        %s177 = smul.u32 %s27, 8
        %s178 = sadd.s32 %s176, %s177
        %s179 = sld [smem:[#allocation4 + %s178]]
        %p180 = scmp.gt.s32.totalorder %s179, 0
        %s181 = scalar_select %p180, %s179, 0
        %p182 = scmp.lt.s32.totalorder %s181, 63
        %s183 = scalar_select %p182, %s181, 63
        %s184 = scalar_lea.vmem [#allocation5], %s183
        %v185 = vld [vmem:[%s184] sm:$0x1]
        %186 = vst [vmem:[#allocation2] sm:$0x1] %v185
        %s187 = sadd.s32 %s178, 1
        %s188 = sld [smem:[#allocation4 + %s187]]
        %p189 = scmp.gt.s32.totalorder %s188, 0
        %s190 = scalar_select %p189, %s188, 0
        %p191 = scmp.lt.s32.totalorder %s190, 63
        %s192 = scalar_select %p191, %s190, 63
        %s193 = scalar_lea.vmem [#allocation5], %s192
        %v194 = vld [vmem:[%s193] sm:$0x1]
        %195 = vst [vmem:[#allocation2 + $0x1] sm:$0x1] %v194
        %s196 = sadd.s32 %s178, 2
        %s197 = sld [smem:[#allocation4 + %s196]]
        %p198 = scmp.gt.s32.totalorder %s197, 0
        %s199 = scalar_select %p198, %s197, 0
        %p200 = scmp.lt.s32.totalorder %s199, 63
        %s201 = scalar_select %p200, %s199, 63
        %s202 = scalar_lea.vmem [#allocation5], %s201
        %v203 = vld [vmem:[%s202] sm:$0x1]
        %204 = vst [vmem:[#allocation2 + $0x2] sm:$0x1] %v203
        %s205 = sadd.s32 %s178, 3
        %s206 = sld [smem:[#allocation4 + %s205]]
        %p207 = scmp.gt.s32.totalorder %s206, 0
        %s208 = scalar_select %p207, %s206, 0
        %p209 = scmp.lt.s32.totalorder %s208, 63
        %s210 = scalar_select %p209, %s208, 63
        %s211 = scalar_lea.vmem [#allocation5], %s210
        %v212 = vld [vmem:[%s211] sm:$0x1]
        %213 = vst [vmem:[#allocation2 + $0x3] sm:$0x1] %v212
        %s214 = sadd.s32 %s178, 4
        %s215 = sld [smem:[#allocation4 + %s214]]
        %p216 = scmp.gt.s32.totalorder %s215, 0
        %s217 = scalar_select %p216, %s215, 0
        %p218 = scmp.lt.s32.totalorder %s217, 63
        %s219 = scalar_select %p218, %s217, 63
        %s220 = scalar_lea.vmem [#allocation5], %s219
        %v221 = vld [vmem:[%s220] sm:$0x1]
        %222 = vst [vmem:[#allocation2 + $0x4] sm:$0x1] %v221
        %s223 = sadd.s32 %s178, 5
        %s224 = sld [smem:[#allocation4 + %s223]]
        %p225 = scmp.gt.s32.totalorder %s224, 0
        %s226 = scalar_select %p225, %s224, 0
        %p227 = scmp.lt.s32.totalorder %s226, 63
        %s228 = scalar_select %p227, %s226, 63
        %s229 = scalar_lea.vmem [#allocation5], %s228
        %v230 = vld [vmem:[%s229] sm:$0x1]
        %231 = vst [vmem:[#allocation2 + $0x5] sm:$0x1] %v230
        %s232 = sadd.s32 %s178, 6
        %s233 = sld [smem:[#allocation4 + %s232]]
        %p234 = scmp.gt.s32.totalorder %s233, 0
        %s235 = scalar_select %p234, %s233, 0
        %p236 = scmp.lt.s32.totalorder %s235, 63
        %s237 = scalar_select %p236, %s235, 63
        %s238 = scalar_lea.vmem [#allocation5], %s237
        %v239 = vld [vmem:[%s238] sm:$0x1]
        %240 = vst [vmem:[#allocation2 + $0x6] sm:$0x1] %v239
        %s241 = sadd.s32 %s178, 7
        %s242 = sld [smem:[#allocation4 + %s241]]
        %p243 = scmp.gt.s32.totalorder %s242, 0
        %s244 = scalar_select %p243, %s242, 0
        %p245 = scmp.lt.s32.totalorder %s244, 63
        %s246 = scalar_select %p245, %s244, 63
        %s247 = scalar_lea.vmem [#allocation5], %s246
        %v248 = vld [vmem:[%s247] sm:$0x1]
        %249 = vst [vmem:[#allocation2 + $0x7] sm:$0x1] %v248
        %v250 = vld [vmem:[#allocation2] sm:$0xff]
        %v251 = vld [vmem:[#allocation8] sm:$0xff]
        %v252 = vadd.f32 %v250, %v251
        %253 = vst [vmem:[%s175] sm:$0xff] %v252
        %s254 = sand.u32 %s92, 1
        %s255 = scalar_lea.sflag [#allocation7], %s254
        %s256 = sand.u32 %s92, 1
        %s257 = smul.addr %s256, 8
        %s258 = scalar_lea.vmem [#allocation10], %s257
        // Predicated region
        $region37: #{tpu_custom_call.1} parent=27 // pred_check
          %p259 = pneg %p102
        $region38: #{tpu_custom_call.1} parent=27 // pred_check_branch
          %261 = sbr.rel (%p259) target = $region40
        $region39: #{tpu_custom_call.1} parent=27 // pred_region
          %s263 = ssub.s32 128, 128
          %264 = vsyncadd %s255, %s263
          %s265 = sadd.s32 %s27, %s28
          %s266 = smul.addr %s265, 128
          %s267 = scalar_lea.hbm %s3, %s266
          %s269 = sshll.u32 %s258, 4
          %s270 = int_to_ptr.vmem [resolvable:$true] %s269
          %272 = dma.vmem_to_hbm [thread:$0]  %s270, 128, %s267, %s255
        $region40: #{tpu_custom_call.1} parent=27 // pred_fallthru
          _
      $region28: #{tpu_custom_call.1} parent=5 // pred_fallthru
        _
      %p273 = scmp.le.s32.totalorder 2, %s18
      // Predicated region
      $region41: #{tpu_custom_call.1} parent=5 // pred_check
        %p274 = pneg %p273
      $region42: #{tpu_custom_call.1} parent=5 // pred_check_branch
        %276 = sbr.rel (%p274) target = $region44
      $region43: #{tpu_custom_call.1} parent=5 // pred_region
        %s277 = ssub.s32 %s18, 2
        // Predicated region
        $region45: #{tpu_custom_call.1} parent=43 // pred_check
          %p278 = pneg %p108
        $region46: #{tpu_custom_call.1} parent=43 // pred_check_branch
          %280 = sbr.rel (%p278) target = $region48
        $region47: #{tpu_custom_call.1} parent=43 // pred_region
          %s281 = sand.u32 %s93, 1
          %s282 = scalar_lea.sflag [#allocation7], %s281
          %s283 = sand.u32 %s93, 1
          %s284 = smul.addr %s283, 8
          %s285 = scalar_lea.vmem [#allocation10], %s284
          %286 = dma.done %s282, 128
        $region48: #{tpu_custom_call.1} parent=43 // pred_fallthru
          _
      $region44: #{tpu_custom_call.1} parent=5 // pred_fallthru
        _
    $region6: #{tpu_custom_call.1} parent=1 // loop_footer
      %s22 = sadd.s32 1, %s18
    $region7: #{tpu_custom_call.1} parent=1 // loop_footer_branch
      %17 = sbr.rel target = $region3
    $region8: #{tpu_custom_call.1} parent=1 // loop_exit
      _
    %287 = vsyncpa [#allocation6], 1
    %s288 = scalar_lea.sflag [#allocation6], 1
    %289 = vsyncpa %s288, 1
    %290 = vsyncpa [#allocation9], 1
    %291 = vsyncpa [#allocation7], 1
    %s292 = scalar_lea.sflag [#allocation7], 1
    %293 = vsyncpa %s292, 1

</llo_original>
